<compile_context>
chip_gen: v6e
topology: v6e:2x2x1
jax: 0.10.0
libtpu: 0.0.40
codegen_flags: <defaults>
</compile_context>

<pallas_src>
import numpy as np

import jax
import jax.numpy as jnp
from jax.experimental import pallas as pl
from jax.experimental.pallas import tpu as pltpu


def _round_up(n, m):
    return ((n + m - 1) // m) * m


def mlp_feature_kernel(x_ref, w1_ref, b1_ref, w2_ref, b2_ref, w3_ref, b3_ref, o_ref):
    # ----- layer 1: Linear(14 -> 128) + Sigmoid (K=14: keep f32) -----
    h1 = jnp.dot(x_ref[...], w1_ref[...], preferred_element_type=jnp.float32)
    h1 = jax.nn.sigmoid(h1 + b1_ref[...])

    # ----- layer 2: Linear(128 -> 256) + ReLU (bf16 operands, f32 accum) -----
    h2 = jnp.dot(h1.astype(jnp.bfloat16), w2_ref[...],
                 preferred_element_type=jnp.float32)
    h2 = jnp.maximum(h2 + b2_ref[...], 0.0)

    # ----- layer 3: Linear(256 -> 512) + ReLU (bf16 operands, f32 accum) -----
    h3 = jnp.dot(h2.astype(jnp.bfloat16), w3_ref[...],
                 preferred_element_type=jnp.float32)
    o_ref[...] = jnp.maximum(h3 + b3_ref[...], 0.0).astype(o_ref.dtype)


def _choose_tb(B, max_block_b):
    """Batch tile: multiple of 8; multiple of 256 (and >= 2 grid steps) when large."""
    max_block_b = max(256, (max_block_b // 256) * 256)
    if B <= 256:
        return min(_round_up(B, 8), max_block_b)
    # Guarantee >= 2 grid steps so both v7x TensorCores split the "parallel"
    # batch axis; keep the tile a multiple of 256 to keep the MXU full.
    return min(_round_up(pl.cdiv(B, 2), 256), max_block_b)


def mlp_feature(x, w1, b1, w2, b2, w3, b3, *, max_block_b=1024, out_dtype=jnp.float32):
    """x: (B, 14) f32.  Weights (in, out) f32, biases (1, out) f32.  Returns (B, 512)."""
    B, in_dim = x.shape
    hid1 = w1.shape[1]
    hid2 = w2.shape[1]
    out_dim = w3.shape[1]

    tb = _choose_tb(B, max_block_b)
    grid = (pl.cdiv(B, tb),)   # partial last block is masked by Pallas

    # bf16 weights for the two big matmuls (f32 accumulation stays in-kernel).
    w2b = w2.astype(jnp.bfloat16)
    w3b = w3.astype(jnp.bfloat16)

    # Advisory cost estimate for the XLA scheduler (true B, true dtypes).
    out_bytes = B * out_dim * np.dtype(out_dtype).itemsize
    weight_bytes = (4 * (in_dim * hid1 + hid1 + hid2 + out_dim)
                    + 2 * (hid1 * hid2 + hid2 * out_dim))
    cost = pl.CostEstimate(
        flops=2 * B * (in_dim * hid1 + hid1 * hid2 + hid2 * out_dim),
        transcendentals=B * hid1,                       # sigmoid exp
        bytes_accessed=4 * B * in_dim + out_bytes + weight_bytes,
    )

    # Weights/biases: constant index_map -> VMEM-resident across all grid steps.
    const = lambda a: pl.BlockSpec(a.shape, lambda i: (0, 0))

    return pl.pallas_call(
        mlp_feature_kernel,
        out_shape=jax.ShapeDtypeStruct((B, out_dim), out_dtype),
        grid=grid,
        in_specs=[
            pl.BlockSpec((tb, in_dim), lambda i: (i, 0)),   # x tile, pipelined
            const(w1), const(b1),
            const(w2b), const(b2),
            const(w3b), const(b3),
        ],
        out_specs=pl.BlockSpec((tb, out_dim), lambda i: (i, 0)),
        compiler_params=pltpu.CompilerParams(
            dimension_semantics=("parallel",),
            vmem_limit_bytes=32 * 1024 * 1024,
        ),
        cost_estimate=cost,
    )(x, w1, b1, w2b, b2, w3b, b3)


def _init_linear(key, in_f, out_f):
    """Deterministic init mimicking nn.Linear default (uniform +/- 1/sqrt(in_f))."""
    kw, kb = jax.random.split(key)
    bound = 1.0 / jnp.sqrt(jnp.float32(in_f))
    # Stored already transposed: (in_features, out_features).
    w = jax.random.uniform(kw, (in_f, out_f), jnp.float32, -bound, bound)
    b = jax.random.uniform(kb, (1, out_f), jnp.float32, -bound, bound)
    return w, b


def _reference(x, w1, b1, w2, b2, w3, b3):
    h = jax.nn.sigmoid(x @ w1 + b1)
    h = jnp.maximum(h @ w2 + b2, 0.0)
    return jnp.maximum(h @ w3 + b3, 0.0)


if __name__ == "__main__":
    key = jax.random.PRNGKey(0)
    kx1, kx2, kx3, k1, k2, k3 = jax.random.split(key, 6)

    w1, b1 = _init_linear(k1, 14, 128)
    w2, b2 = _init_linear(k2, 128, 256)
    w3, b3 = _init_linear(k3, 256, 512)

    # Cases: sublane-aligned single tile, ragged single tile (masked tail),
    # multi-step grid with a partial last block (exercises constant weight
    # blocks across steps + masked tail writes).
    for B, kx in ((8, kx1), (13, kx2), (272, kx3)):
        x = jax.random.normal(kx, (B, 14), jnp.float32)
        out = jax.block_until_ready(mlp_feature(x, w1, b1, w2, b2, w3, b3))
        ref = _reference(x, w1, b1, w2, b2, w3, b3)
        assert out.shape == (B, 512), out.shape
        assert out.dtype == jnp.float32, out.dtype
        # Layers 2-3 use bf16 MXU operands (f32 accumulation) -> relaxed tolerance.
        assert jnp.allclose(out, ref, atol=5e-2, rtol=5e-2), f"mismatch vs reference (B={B})"

    print("KERNEL_OK")
</pallas_src>

<mosaic_0001>
module attributes {stable_mosaic.version = 11 : i64} {
  func.func @mlp_feature_kernel(%arg0: i32, %arg1: memref<8x14xf32, #tpu.memory_space<vmem>>, %arg2: memref<14x128xf32, #tpu.memory_space<vmem>>, %arg3: memref<1x128xf32, #tpu.memory_space<vmem>>, %arg4: memref<128x256xbf16, #tpu.memory_space<vmem>>, %arg5: memref<1x256xf32, #tpu.memory_space<vmem>>, %arg6: memref<256x512xbf16, #tpu.memory_space<vmem>>, %arg7: memref<1x512xf32, #tpu.memory_space<vmem>>, %arg8: memref<8x512xf32, #tpu.memory_space<vmem>>) attributes {dimension_semantics = [#tpu.dimension_semantics<parallel>], iteration_bounds = array<i64: 1>, scalar_prefetch = 0 : i64, scratch_operands = 0 : i64, tpu.core_type = #tpu.core_type<tc>, window_params = [{transform_indices = @transform_0, window_bounds = array<i64: 8, 14>}, {pipeline_mode = #tpu.pipeline_mode<synchronous>, transform_indices = @transform_1, window_bounds = array<i64: 14, 128>}, {pipeline_mode = #tpu.pipeline_mode<synchronous>, transform_indices = @transform_2, window_bounds = array<i64: 1, 128>}, {pipeline_mode = #tpu.pipeline_mode<synchronous>, transform_indices = @transform_3, window_bounds = array<i64: 128, 256>}, {pipeline_mode = #tpu.pipeline_mode<synchronous>, transform_indices = @transform_4, window_bounds = array<i64: 1, 256>}, {pipeline_mode = #tpu.pipeline_mode<synchronous>, transform_indices = @transform_5, window_bounds = array<i64: 256, 512>}, {pipeline_mode = #tpu.pipeline_mode<synchronous>, transform_indices = @transform_6, window_bounds = array<i64: 1, 512>}, {transform_indices = @transform_7, window_bounds = array<i64: 8, 512>}]} {
    %c0 = arith.constant 0 : index
    %c0_0 = arith.constant 0 : index
    %0 = vector.load %arg1[%c0, %c0_0] : memref<8x14xf32, #tpu.memory_space<vmem>>, vector<8x14xf32>
    %c0_1 = arith.constant 0 : index
    %c0_2 = arith.constant 0 : index
    %1 = vector.load %arg2[%c0_1, %c0_2] : memref<14x128xf32, #tpu.memory_space<vmem>>, vector<14x128xf32>
    %cst = arith.constant dense<0.000000e+00> : vector<8x128xf32>
    %2 = tpu.matmul %0, %1, %cst {dimension_numbers = #tpu.dot_dimension_numbers<[1], [0], [0], [1], [0, 0, 1, 1], [], []>} : vector<8x14xf32>, vector<14x128xf32>, vector<8x128xf32> -> vector<8x128xf32>
    %c0_3 = arith.constant 0 : index
    %c0_4 = arith.constant 0 : index
    %3 = vector.load %arg3[%c0_3, %c0_4] : memref<1x128xf32, #tpu.memory_space<vmem>>, vector<1x128xf32>
    %4 = vector.broadcast %3 : vector<1x128xf32> to vector<8x128xf32>
    %5 = arith.addf %2, %4 : vector<8x128xf32>
    %6 = arith.negf %5 : vector<8x128xf32>
    %7 = math.exp %6 : vector<8x128xf32>
    %cst_5 = arith.constant 1.000000e+00 : f32
    %8 = vector.broadcast %cst_5 : f32 to vector<8x128xf32>
    %9 = arith.addf %8, %7 : vector<8x128xf32>
    %10 = arith.divf %8, %9 : vector<8x128xf32>
    %11 = arith.truncf %10 : vector<8x128xf32> to vector<8x128xbf16>
    %c0_6 = arith.constant 0 : index
    %c0_7 = arith.constant 0 : index
    %12 = vector.load %arg4[%c0_6, %c0_7] : memref<128x256xbf16, #tpu.memory_space<vmem>>, vector<128x256xbf16>
    %cst_8 = arith.constant dense<0.000000e+00> : vector<8x256xf32>
    %13 = tpu.matmul %11, %12, %cst_8 {dimension_numbers = #tpu.dot_dimension_numbers<[1], [0], [0], [1], [0, 0, 1, 1], [], []>} : vector<8x128xbf16>, vector<128x256xbf16>, vector<8x256xf32> -> vector<8x256xf32>
    %c0_9 = arith.constant 0 : index
    %c0_10 = arith.constant 0 : index
    %14 = vector.load %arg5[%c0_9, %c0_10] : memref<1x256xf32, #tpu.memory_space<vmem>>, vector<1x256xf32>
    %15 = vector.broadcast %14 : vector<1x256xf32> to vector<8x256xf32>
    %16 = arith.addf %13, %15 : vector<8x256xf32>
    %cst_11 = arith.constant 0.000000e+00 : f32
    %17 = vector.broadcast %cst_11 : f32 to vector<8x256xf32>
    %18 = arith.maximumf %16, %17 : vector<8x256xf32>
    %19 = arith.truncf %18 : vector<8x256xf32> to vector<8x256xbf16>
    %c0_12 = arith.constant 0 : index
    %c0_13 = arith.constant 0 : index
    %20 = vector.load %arg6[%c0_12, %c0_13] : memref<256x512xbf16, #tpu.memory_space<vmem>>, vector<256x512xbf16>
    %cst_14 = arith.constant dense<0.000000e+00> : vector<8x512xf32>
    %21 = tpu.matmul %19, %20, %cst_14 {dimension_numbers = #tpu.dot_dimension_numbers<[1], [0], [0], [1], [0, 0, 1, 1], [], []>} : vector<8x256xbf16>, vector<256x512xbf16>, vector<8x512xf32> -> vector<8x512xf32>
    %c0_15 = arith.constant 0 : index
    %c0_16 = arith.constant 0 : index
    %22 = vector.load %arg7[%c0_15, %c0_16] : memref<1x512xf32, #tpu.memory_space<vmem>>, vector<1x512xf32>
    %23 = vector.broadcast %22 : vector<1x512xf32> to vector<8x512xf32>
    %24 = arith.addf %21, %23 : vector<8x512xf32>
    %cst_17 = arith.constant 0.000000e+00 : f32
    %25 = vector.broadcast %cst_17 : f32 to vector<8x512xf32>
    %26 = arith.maximumf %24, %25 : vector<8x512xf32>
    %c0_18 = arith.constant 0 : index
    %c0_19 = arith.constant 0 : index
    %27 = vector.load %arg8[%c0_18, %c0_19] : memref<8x512xf32, #tpu.memory_space<vmem>>, vector<8x512xf32>
    tpu.vector_store %arg8[%c0_18, %c0_19], %26 {strides = array<i32>} : memref<8x512xf32, #tpu.memory_space<vmem>>, vector<8x512xf32>,
    return
  }
  func.func @transform_0(%arg0: i32) -> (i32, i32) {
    %c0_i32 = arith.constant 0 : i32
    %c0_i32_0 = arith.constant 0 : i32
    return %arg0, %c0_i32 : i32, i32
  }
  func.func @transform_1(%arg0: i32) -> (i32, i32) {
    %c0_i32 = arith.constant 0 : i32
    %c0_i32_0 = arith.constant 0 : i32
    %c0_i32_1 = arith.constant 0 : i32
    return %c0_i32, %c0_i32_0 : i32, i32
  }
  func.func @transform_2(%arg0: i32) -> (i32, i32) {
    %c0_i32 = arith.constant 0 : i32
    %c0_i32_0 = arith.constant 0 : i32
    %c0_i32_1 = arith.constant 0 : i32
    return %c0_i32, %c0_i32_0 : i32, i32
  }
  func.func @transform_3(%arg0: i32) -> (i32, i32) {
    %c0_i32 = arith.constant 0 : i32
    %c0_i32_0 = arith.constant 0 : i32
    %c0_i32_1 = arith.constant 0 : i32
    return %c0_i32, %c0_i32_0 : i32, i32
  }
  func.func @transform_4(%arg0: i32) -> (i32, i32) {
    %c0_i32 = arith.constant 0 : i32
    %c0_i32_0 = arith.constant 0 : i32
    %c0_i32_1 = arith.constant 0 : i32
    return %c0_i32, %c0_i32_0 : i32, i32
  }
  func.func @transform_5(%arg0: i32) -> (i32, i32) {
    %c0_i32 = arith.constant 0 : i32
    %c0_i32_0 = arith.constant 0 : i32
    %c0_i32_1 = arith.constant 0 : i32
    return %c0_i32, %c0_i32_0 : i32, i32
  }
  func.func @transform_6(%arg0: i32) -> (i32, i32) {
    %c0_i32 = arith.constant 0 : i32
    %c0_i32_0 = arith.constant 0 : i32
    %c0_i32_1 = arith.constant 0 : i32
    return %c0_i32, %c0_i32_0 : i32, i32
  }
  func.func @transform_7(%arg0: i32) -> (i32, i32) {
    %c0_i32 = arith.constant 0 : i32
    %c0_i32_0 = arith.constant 0 : i32
    return %arg0, %c0_i32 : i32, i32
  }
}

</mosaic_0001>

<llo_original>
// kernel: tpu_custom_call.1
$region0: #{tpu_custom_call.1}
  #allocation0 [shape = 'u32[]', space=smem, size = 0x4, offset = 0x4, fixed_abs, tag = 'smem constant byte address 0x4 - core index']
  #allocation1 [shape = 'u32[144,128]{1,0:T(1,128)}', space=vmem, size = 0x12000, scoped, tag = 'internal scratch']
  %s0 = inlined_call_operand.hbm [shape: f32[8,14], index: 0, kind: input, shape index: {}]
  %s1 = inlined_call_operand.hbm [shape: f32[14,128], index: 1, kind: input, shape index: {}]
  %s2 = inlined_call_operand.vmem [shape: f32[1,128], index: 2, kind: input, shape index: {}]
  %s3 = inlined_call_operand.hbm [shape: bf16[128,256], index: 3, kind: input, shape index: {}]
  %s4 = inlined_call_operand.vmem [shape: f32[1,256], index: 4, kind: input, shape index: {}]
  %s5 = inlined_call_operand.hbm [shape: bf16[256,512], index: 5, kind: input, shape index: {}]
  %s6 = inlined_call_operand.vmem [shape: f32[1,512], index: 6, kind: input, shape index: {}]
  %s7 = inlined_call_operand.hbm [shape: f32[8,512], index: 7, kind: output, shape index: {}]
  %s8 = sld [smem:[#allocation0]]
  $region54: #{tpu_custom_call.1} parent=0
    _
  %s10 = ssub.s32 1, %s8
  %s11 = scalar_select 0, %s10, %s8
  $region1: #{tpu_custom_call.1} parent=0
    #allocation2 [shape = 'u8[4096]{0}', space=vmem, size = 0x1000, scoped, tag = 'input window, operand 0, single buffered']
    #allocation3 [shape = 's32[1]{0}', space=sflag, size = 0x4, scoped, tag = 'scoped memory for tpu_custom_call.1']
    #allocation4 [shape = 's32[1]{0}', space=sflag, size = 0x4, scoped, tag = 'scoped memory for tpu_custom_call.1']
    #allocation5 [shape = 'u8[8192]{0}', space=vmem, size = 0x2000, scoped, tag = 'input window, operand 1, single buffered']
    #allocation6 [shape = 's32[1]{0}', space=sflag, size = 0x4, scoped, tag = 'scoped memory for tpu_custom_call.1']
    #allocation7 [shape = 'u8[65536]{0}', space=vmem, size = 0x10000, scoped, tag = 'input window, operand 3, single buffered']
    #allocation8 [shape = 'u8[262144]{0}', space=vmem, size = 0x40000, scoped, tag = 'input window, operand 5, single buffered']
    #allocation9 [shape = 's32[1]{0}', space=sflag, size = 0x4, scoped, tag = 'scoped memory for tpu_custom_call.1']
    #allocation10 [shape = 'u8[16384]{0}', space=vmem, size = 0x4000, scoped, tag = 'output window, operand 0, single buffered']
    %12 = vsyncpa [#allocation3], 0
    %13 = vsyncpa [#allocation6], 0
    %14 = vsyncpa [#allocation9], 0
    %15 = vsyncpa [#allocation4], 0
    // Predicated region
    $region2: #{tpu_custom_call.1} parent=1 // pred_check
      _
    $region3: #{tpu_custom_call.1} parent=1 // pred_check_branch
      %17 = sbr.rel (0) target = $region5
    $region4: #{tpu_custom_call.1} parent=1 // pred_region
      %s19 = ssub.s32 128, 128
      %20 = vsyncadd [#allocation3], %s19
      %s22 = sshll.u32 [#allocation2], 4
      %s23 = int_to_ptr.vmem [resolvable:$true] %s22
      %25 = dma.hbm_to_vmem [thread:$0]  %s0, 128, %s23, [#allocation3]
    $region5: #{tpu_custom_call.1} parent=1 // pred_fallthru
      _
    // Predicated region
    $region6: #{tpu_custom_call.1} parent=1 // pred_check
      _
    $region7: #{tpu_custom_call.1} parent=1 // pred_check_branch
      %27 = sbr.rel (0) target = $region9
    $region8: #{tpu_custom_call.1} parent=1 // pred_region
      %s29 = ssub.s32 256, 256
      %30 = vsyncadd [#allocation6], %s29
      %s31 = sshll.u32 [#allocation5], 4
      %s32 = int_to_ptr.vmem [resolvable:$true] %s31
      %37 = dma.hbm_to_vmem [thread:$0]  %s1, 256, %s32, [#allocation6], 128, 128, 8
    $region9: #{tpu_custom_call.1} parent=1 // pred_fallthru
      _
    // Predicated region
    $region10: #{tpu_custom_call.1} parent=1 // pred_check
      _
    $region11: #{tpu_custom_call.1} parent=1 // pred_check_branch
      %39 = sbr.rel (0) target = $region13
    $region12: #{tpu_custom_call.1} parent=1 // pred_region
      _
    $region13: #{tpu_custom_call.1} parent=1 // pred_fallthru
      _
    // Predicated region
    $region14: #{tpu_custom_call.1} parent=1 // pred_check
      _
    $region15: #{tpu_custom_call.1} parent=1 // pred_check_branch
      %41 = sbr.rel (0) target = $region17
    $region16: #{tpu_custom_call.1} parent=1 // pred_region
      %s43 = ssub.s32 2048, 2048
      %44 = vsyncadd [#allocation6], %s43
      %s45 = sshll.u32 [#allocation7], 4
      %s46 = int_to_ptr.vmem [resolvable:$true] %s45
      %51 = dma.hbm_to_vmem [thread:$0]  %s3, 2048, %s46, [#allocation6], 128, 128, 8
    $region17: #{tpu_custom_call.1} parent=1 // pred_fallthru
      _
    // Predicated region
    $region18: #{tpu_custom_call.1} parent=1 // pred_check
      _
    $region19: #{tpu_custom_call.1} parent=1 // pred_check_branch
      %53 = sbr.rel (0) target = $region21
    $region20: #{tpu_custom_call.1} parent=1 // pred_region
      _
    $region21: #{tpu_custom_call.1} parent=1 // pred_fallthru
      _
    // Predicated region
    $region22: #{tpu_custom_call.1} parent=1 // pred_check
      _
    $region23: #{tpu_custom_call.1} parent=1 // pred_check_branch
      %55 = sbr.rel (0) target = $region25
    $region24: #{tpu_custom_call.1} parent=1 // pred_region
      %s57 = ssub.s32 8192, 8192
      %58 = vsyncadd [#allocation9], %s57
      %s59 = sshll.u32 [#allocation8], 4
      %s60 = int_to_ptr.vmem [resolvable:$true] %s59
      %65 = dma.hbm_to_vmem [thread:$0]  %s5, 8192, %s60, [#allocation9], 256, 256, 16
    $region25: #{tpu_custom_call.1} parent=1 // pred_fallthru
      _
    // Predicated region
    $region26: #{tpu_custom_call.1} parent=1 // pred_check
      _
    $region27: #{tpu_custom_call.1} parent=1 // pred_check_branch
      %67 = sbr.rel (0) target = $region29
    $region28: #{tpu_custom_call.1} parent=1 // pred_region
      _
    $region29: #{tpu_custom_call.1} parent=1 // pred_fallthru
      _
    // Predicated region
    $region30: #{tpu_custom_call.1} parent=1 // pred_check
      _
    $region31: #{tpu_custom_call.1} parent=1 // pred_check_branch
      %69 = sbr.rel (0) target = $region33
    $region32: #{tpu_custom_call.1} parent=1 // pred_region
      %70 = dma.done [#allocation3], 128
    $region33: #{tpu_custom_call.1} parent=1 // pred_fallthru
      _
    // Predicated region
    $region34: #{tpu_custom_call.1} parent=1 // pred_check
      _
    $region35: #{tpu_custom_call.1} parent=1 // pred_check_branch
      %72 = sbr.rel (0) target = $region37
    $region36: #{tpu_custom_call.1} parent=1 // pred_region
      %73 = dma.done [#allocation6], 256
    $region37: #{tpu_custom_call.1} parent=1 // pred_fallthru
      _
    // Predicated region
    $region38: #{tpu_custom_call.1} parent=1 // pred_check
      _
    $region39: #{tpu_custom_call.1} parent=1 // pred_check_branch
      %75 = sbr.rel (0) target = $region41
    $region40: #{tpu_custom_call.1} parent=1 // pred_region
      %76 = dma.done [#allocation6], 2048
    $region41: #{tpu_custom_call.1} parent=1 // pred_fallthru
      _
    // Predicated region
    $region42: #{tpu_custom_call.1} parent=1 // pred_check
      _
    $region43: #{tpu_custom_call.1} parent=1 // pred_check_branch
      %78 = sbr.rel (0) target = $region45
    $region44: #{tpu_custom_call.1} parent=1 // pred_region
      %79 = dma.done [#allocation9], 8192
    $region45: #{tpu_custom_call.1} parent=1 // pred_fallthru
      _
    %v81 = vld [vmem:[#allocation2] sm:$0xff]
    %v82 = vld [vmem:[#allocation5] sm:$0xff]
    %v83 = vld [vmem:[#allocation5 + $0x8] sm:$0x3f]
    %v84 = vld [vmem:[%s2] sm:$0x1]
    %v86 = vlaneseq
    %v87 = vshrl.u32 %v86, 7
    %v88 = vsub.s32 0, %v87
    %v89 = vrot.slane %v84, %v88
    %vm91 = vcmask 113664
    %v93 = vsel %vm91, %v81, 0
    %vm95 = vcmask 1045504
    %v97 = vsel %vm95, %v83, 0
    %99 = vmatprep.subr.mxu0 0.0
    %100 = vmatpush1.msra.mxu0 0.0
    %101 = vmatprep.subr.mxu0 0.0
    %102 = vmatpush1.msra.mxu0 0.0
    %103 = vmatprep.subr.mxu0 0.0
    %104 = vmatpush1.msra.mxu0 0.0
    %105 = vmatprep.subr.mxu0 0.0
    %106 = vmatpush1.msra.mxu0 0.0
    %107 = vmatprep.subr.mxu0 0.0
    %108 = vmatpush1.msra.mxu0 0.0
    %109 = vmatprep.subr.mxu0 0.0
    %110 = vmatpush1.msra.mxu0 0.0
    %111 = vmatprep.subr.mxu0 0.0
    %112 = vmatpush1.msra.mxu0 0.0
    %113 = vmatprep.subr.mxu0 0.0
    %114 = vmatpush1.msra.mxu0 0.0
    %115 = vmatprep.subr.mxu0 0.0
    %116 = vmatpush1.msra.mxu0 0.0
    %117 = vmatprep.subr.mxu0 0.0
    %118 = vmatpush1.msra.mxu0 0.0
    %119 = vmatprep.subr.mxu0 0.0
    %120 = vmatpush1.msra.mxu0 0.0
    %121 = vmatprep.subr.mxu0 0.0
    %122 = vmatpush1.msra.mxu0 0.0
    %123 = vmatprep.subr.mxu0 0.0
    %124 = vmatpush1.msra.mxu0 0.0
    %125 = vmatprep.subr.mxu0 0.0
    %126 = vmatpush1.msra.mxu0 0.0
    %127 = vmatprep.subr.mxu0 0.0
    %128 = vmatpush1.msra.mxu0 %v97
    %129 = vmatprep.subr.mxu0 0.0
    %130 = vmatpush1.msra.mxu0 %v82
    %131 = vmatprep.subr.mxu0 0.0
    %132 = vmatpush2.msra.mxu0 0.0
    %133 = vmatprep.subr.mxu0 0.0
    %134 = vmatpush2.msra.mxu0 0.0
    %135 = vmatprep.subr.mxu0 0.0
    %136 = vmatpush2.msra.mxu0 0.0
    %137 = vmatprep.subr.mxu0 0.0
    %138 = vmatpush2.msra.mxu0 0.0
    %139 = vmatprep.subr.mxu0 0.0
    %140 = vmatpush2.msra.mxu0 0.0
    %141 = vmatprep.subr.mxu0 0.0
    %142 = vmatpush2.msra.mxu0 0.0
    %143 = vmatprep.subr.mxu0 0.0
    %144 = vmatpush2.msra.mxu0 0.0
    %145 = vmatprep.subr.mxu0 0.0
    %146 = vmatpush2.msra.mxu0 0.0
    %147 = vmatprep.subr.mxu0 0.0
    %148 = vmatpush2.msra.mxu0 0.0
    %149 = vmatprep.subr.mxu0 0.0
    %150 = vmatpush2.msra.mxu0 0.0
    %151 = vmatprep.subr.mxu0 0.0
    %152 = vmatpush2.msra.mxu0 0.0
    %153 = vmatprep.subr.mxu0 0.0
    %154 = vmatpush2.msra.mxu0 0.0
    %155 = vmatprep.subr.mxu0 0.0
    %156 = vmatpush2.msra.mxu0 0.0
    %157 = vmatprep.subr.mxu0 0.0
    %158 = vmatpush2.msra.mxu0 0.0
    %159 = vmatprep.subr.mxu0 0.0
    %160 = vmatpush2.msra.mxu0 0.0
    %161 = vmatprep.subr.mxu0 0.0
    %162 = vmatpush2.msra.mxu0 0.0
    %163 = vmatprep.mubr.f32.mxu0 0.0
    %164 = vmatmul.mubr.f32.gmra.mxu0 %v93
    %v165 = vpop.f32.mrf.mxu0
    %v166 = vadd.f32 %v89, %v165
    %v167 = vpop.f32.mrf.mxu0
    %168 = vdwg.mxu0
    %v169 = vxor.u32 %v166, 2147483648
    %v170 = vmul.f32 %v169, 1.442695
    %v171 = vpow.pop %v170
    %v172 = vadd.f32 %v171, 1.0
    %v173 = vrcp.pop %v172
    %v174 = vmul.f32 1.0, %v173
    %v175 = vpack.c.bf16 %v174, %v174
    %v176 = vld [vmem:[#allocation7] sm:$0xff]
    %v177 = vld [vmem:[#allocation7 + $0x8] sm:$0xff]
    %v178 = vld [vmem:[#allocation7 + $0x10] sm:$0xff]
    %v179 = vld [vmem:[#allocation7 + $0x18] sm:$0xff]
    %v180 = vld [vmem:[#allocation7 + $0x20] sm:$0xff]
    %v181 = vld [vmem:[#allocation7 + $0x28] sm:$0xff]
    %v182 = vld [vmem:[#allocation7 + $0x30] sm:$0xff]
    %v183 = vld [vmem:[#allocation7 + $0x38] sm:$0xff]
    %v184 = vld [vmem:[#allocation7 + $0x40] sm:$0xff]
    %v185 = vld [vmem:[#allocation7 + $0x48] sm:$0xff]
    %v186 = vld [vmem:[#allocation7 + $0x50] sm:$0xff]
    %v187 = vld [vmem:[#allocation7 + $0x58] sm:$0xff]
    %v188 = vld [vmem:[#allocation7 + $0x60] sm:$0xff]
    %v189 = vld [vmem:[#allocation7 + $0x68] sm:$0xff]
    %v190 = vld [vmem:[#allocation7 + $0x70] sm:$0xff]
    %v191 = vld [vmem:[#allocation7 + $0x78] sm:$0xff]
    %v192 = vld [vmem:[%s4] sm:$0x3]
    %v194 = vlaneseq
    %v195 = vshrl.u32 %v194, 7
    %v196 = vsub.s32 0, %v195
    %v197 = vrot.slane %v192, %v196
    %v198 = vlaneseq
    %v199 = vshrl.u32 %v198, 7
    %v200 = vsub.s32 1, %v199
    %v201 = vrot.slane %v192, %v200
    %v220 = vunpack.c.l.b16 %v176
    %v221 = vunpack.c.h.b16 %v176
    %v222 = vunpack.c.l.b16 %v177
    %v223 = vunpack.c.h.b16 %v177
    %v224 = vunpack.c.l.b16 %v178
    %v225 = vunpack.c.h.b16 %v178
    %v226 = vunpack.c.l.b16 %v179
    %v227 = vunpack.c.h.b16 %v179
    %v228 = vunpack.c.l.b16 %v180
    %v229 = vunpack.c.h.b16 %v180
    %v230 = vunpack.c.l.b16 %v181
    %v231 = vunpack.c.h.b16 %v181
    %v232 = vunpack.c.l.b16 %v182
    %v233 = vunpack.c.h.b16 %v182
    %v234 = vunpack.c.l.b16 %v183
    %v235 = vunpack.c.h.b16 %v183
    %v236 = vunpack.c.l.b16 %v184
    %v237 = vunpack.c.h.b16 %v184
    %v238 = vunpack.c.l.b16 %v185
    %v239 = vunpack.c.h.b16 %v185
    %v240 = vunpack.c.l.b16 %v186
    %v241 = vunpack.c.h.b16 %v186
    %v242 = vunpack.c.l.b16 %v187
    %v243 = vunpack.c.h.b16 %v187
    %v244 = vunpack.c.l.b16 %v188
    %v245 = vunpack.c.h.b16 %v188
    %v246 = vunpack.c.l.b16 %v189
    %v247 = vunpack.c.h.b16 %v189
    %v248 = vunpack.c.l.b16 %v190
    %v249 = vunpack.c.h.b16 %v190
    %v250 = vunpack.c.l.b16 %v191
    %v251 = vunpack.c.h.b16 %v191
    %v252 = vpack.c.b16 %v222, %v220
    %v253 = vpack.c.b16 %v223, %v221
    %v254 = vpack.c.b16 %v226, %v224
    %v255 = vpack.c.b16 %v227, %v225
    %v256 = vpack.c.b16 %v230, %v228
    %v257 = vpack.c.b16 %v231, %v229
    %v258 = vpack.c.b16 %v234, %v232
    %v259 = vpack.c.b16 %v235, %v233
    %v260 = vpack.c.b16 %v238, %v236
    %v261 = vpack.c.b16 %v239, %v237
    %v262 = vpack.c.b16 %v242, %v240
    %v263 = vpack.c.b16 %v243, %v241
    %v264 = vpack.c.b16 %v246, %v244
    %v265 = vpack.c.b16 %v247, %v245
    %v266 = vpack.c.b16 %v250, %v248
    %v267 = vpack.c.b16 %v251, %v249
    %284 = vmatprep.subr.bf16.mxu0 %v267
    %285 = vmatpush1.bf16.msra.mxu0 %v266
    %286 = vmatprep.subr.bf16.mxu0 %v265
    %287 = vmatpush1.bf16.msra.mxu0 %v264
    %288 = vmatprep.subr.bf16.mxu0 %v263
    %289 = vmatpush1.bf16.msra.mxu0 %v262
    %290 = vmatprep.subr.bf16.mxu0 %v261
    %291 = vmatpush1.bf16.msra.mxu0 %v260
    %292 = vmatprep.subr.bf16.mxu0 %v259
    %293 = vmatpush1.bf16.msra.mxu0 %v258
    %294 = vmatprep.subr.bf16.mxu0 %v257
    %295 = vmatpush1.bf16.msra.mxu0 %v256
    %296 = vmatprep.subr.bf16.mxu0 %v255
    %297 = vmatpush1.bf16.msra.mxu0 %v254
    %298 = vmatprep.subr.bf16.mxu0 %v253
    %299 = vmatpush1.bf16.msra.mxu0 %v252
    %300 = vmatprep.subr.bf16.mxu0 0
    %301 = vmatpush2.bf16.msra.mxu0 0
    %302 = vmatprep.subr.bf16.mxu0 0
    %303 = vmatpush2.bf16.msra.mxu0 0
    %304 = vmatprep.subr.bf16.mxu0 0
    %305 = vmatpush2.bf16.msra.mxu0 0
    %306 = vmatprep.subr.bf16.mxu0 0
    %307 = vmatpush2.bf16.msra.mxu0 0
    %308 = vmatprep.subr.bf16.mxu0 0
    %309 = vmatpush2.bf16.msra.mxu0 0
    %310 = vmatprep.subr.bf16.mxu0 0
    %311 = vmatpush2.bf16.msra.mxu0 0
    %312 = vmatprep.subr.bf16.mxu0 0
    %313 = vmatpush2.bf16.msra.mxu0 0
    %314 = vmatprep.subr.bf16.mxu0 0
    %315 = vmatpush2.bf16.msra.mxu0 0
    %316 = vmatprep.mubr.bf16.mxu0 0
    %317 = vmatmul.mubr.bf16.gmra.mxu0 %v175
    %v318 = vpop.f32.mrf.mxu0
    %v319 = vadd.f32 %v197, %v318
    %v320 = vpop.f32.mrf.mxu0
    %v321 = vadd.f32 %v201, %v320
    %v322 = vpop.f32.mrf.mxu0
    %v323 = vpop.f32.mrf.mxu0
    %324 = vdwg.mxu0
    %v325 = vmax.f32 %v319, 0.0
    %v326 = vmax.f32 %v321, 0.0
    %v327 = vpack.c.bf16 %v325, %v325
    %v328 = vpack.c.bf16 %v326, %v326
    %v329 = vld [vmem:[#allocation8] sm:$0xff]
    %v330 = vld [vmem:[#allocation8 + $0x8] sm:$0xff]
    %v331 = vld [vmem:[#allocation8 + $0x10] sm:$0xff]
    %v332 = vld [vmem:[#allocation8 + $0x18] sm:$0xff]
    %v333 = vld [vmem:[#allocation8 + $0x20] sm:$0xff]
    %v334 = vld [vmem:[#allocation8 + $0x28] sm:$0xff]
    %v335 = vld [vmem:[#allocation8 + $0x30] sm:$0xff]
    %v336 = vld [vmem:[#allocation8 + $0x38] sm:$0xff]
    %v337 = vld [vmem:[#allocation8 + $0x40] sm:$0xff]
    %v338 = vld [vmem:[#allocation8 + $0x48] sm:$0xff]
    %v339 = vld [vmem:[#allocation8 + $0x50] sm:$0xff]
    %v340 = vld [vmem:[#allocation8 + $0x58] sm:$0xff]
    %v341 = vld [vmem:[#allocation8 + $0x60] sm:$0xff]
    %v342 = vld [vmem:[#allocation8 + $0x68] sm:$0xff]
    %v343 = vld [vmem:[#allocation8 + $0x70] sm:$0xff]
    %v344 = vld [vmem:[#allocation8 + $0x78] sm:$0xff]
    %v345 = vld [vmem:[#allocation8 + $0x80] sm:$0xff]
    %v346 = vld [vmem:[#allocation8 + $0x88] sm:$0xff]
    %v347 = vld [vmem:[#allocation8 + $0x90] sm:$0xff]
    %v348 = vld [vmem:[#allocation8 + $0x98] sm:$0xff]
    %v349 = vld [vmem:[#allocation8 + $0xa0] sm:$0xff]
    %v350 = vld [vmem:[#allocation8 + $0xa8] sm:$0xff]
    %v351 = vld [vmem:[#allocation8 + $0xb0] sm:$0xff]
    %v352 = vld [vmem:[#allocation8 + $0xb8] sm:$0xff]
    %v353 = vld [vmem:[#allocation8 + $0xc0] sm:$0xff]
    %v354 = vld [vmem:[#allocation8 + $0xc8] sm:$0xff]
    %v355 = vld [vmem:[#allocation8 + $0xd0] sm:$0xff]
    %v356 = vld [vmem:[#allocation8 + $0xd8] sm:$0xff]
    %v357 = vld [vmem:[#allocation8 + $0xe0] sm:$0xff]
    %v358 = vld [vmem:[#allocation8 + $0xe8] sm:$0xff]
    %v359 = vld [vmem:[#allocation8 + $0xf0] sm:$0xff]
    %v360 = vld [vmem:[#allocation8 + $0xf8] sm:$0xff]
    %v361 = vld [vmem:[#allocation8 + $0x100] sm:$0xff]
    %v362 = vld [vmem:[#allocation8 + $0x108] sm:$0xff]
    %v363 = vld [vmem:[#allocation8 + $0x110] sm:$0xff]
    %v364 = vld [vmem:[#allocation8 + $0x118] sm:$0xff]
    %v365 = vld [vmem:[#allocation8 + $0x120] sm:$0xff]
    %v366 = vld [vmem:[#allocation8 + $0x128] sm:$0xff]
    %v367 = vld [vmem:[#allocation8 + $0x130] sm:$0xff]
    %v368 = vld [vmem:[#allocation8 + $0x138] sm:$0xff]
    %v369 = vld [vmem:[#allocation8 + $0x140] sm:$0xff]
    %v370 = vld [vmem:[#allocation8 + $0x148] sm:$0xff]
    %v371 = vld [vmem:[#allocation8 + $0x150] sm:$0xff]
    %v372 = vld [vmem:[#allocation8 + $0x158] sm:$0xff]
    %v373 = vld [vmem:[#allocation8 + $0x160] sm:$0xff]
    %v374 = vld [vmem:[#allocation8 + $0x168] sm:$0xff]
    %v375 = vld [vmem:[#allocation8 + $0x170] sm:$0xff]
    %v376 = vld [vmem:[#allocation8 + $0x178] sm:$0xff]
    %v377 = vld [vmem:[#allocation8 + $0x180] sm:$0xff]
    %v378 = vld [vmem:[#allocation8 + $0x188] sm:$0xff]
    %v379 = vld [vmem:[#allocation8 + $0x190] sm:$0xff]
    %v380 = vld [vmem:[#allocation8 + $0x198] sm:$0xff]
    %v381 = vld [vmem:[#allocation8 + $0x1a0] sm:$0xff]
    %v382 = vld [vmem:[#allocation8 + $0x1a8] sm:$0xff]
    %v383 = vld [vmem:[#allocation8 + $0x1b0] sm:$0xff]
    %v384 = vld [vmem:[#allocation8 + $0x1b8] sm:$0xff]
    %v385 = vld [vmem:[#allocation8 + $0x1c0] sm:$0xff]
    %v386 = vld [vmem:[#allocation8 + $0x1c8] sm:$0xff]
    %v387 = vld [vmem:[#allocation8 + $0x1d0] sm:$0xff]
    %v388 = vld [vmem:[#allocation8 + $0x1d8] sm:$0xff]
    %v389 = vld [vmem:[#allocation8 + $0x1e0] sm:$0xff]
    %v390 = vld [vmem:[#allocation8 + $0x1e8] sm:$0xff]
    %v391 = vld [vmem:[#allocation8 + $0x1f0] sm:$0xff]
    %v392 = vld [vmem:[#allocation8 + $0x1f8] sm:$0xff]
    %v393 = vld [vmem:[%s6] sm:$0xf]
    %v395 = vlaneseq
    %v396 = vshrl.u32 %v395, 7
    %v397 = vsub.s32 0, %v396
    %v398 = vrot.slane %v393, %v397
    %v399 = vlaneseq
    %v400 = vshrl.u32 %v399, 7
    %v401 = vsub.s32 1, %v400
    %v402 = vrot.slane %v393, %v401
    %v403 = vlaneseq
    %v404 = vshrl.u32 %v403, 7
    %v405 = vsub.s32 2, %v404
    %v406 = vrot.slane %v393, %v405
    %v407 = vlaneseq
    %v408 = vshrl.u32 %v407, 7
    %v409 = vsub.s32 3, %v408
    %v410 = vrot.slane %v393, %v409
    %v479 = vunpack.c.l.b16 %v329
    %v480 = vunpack.c.h.b16 %v329
    %v481 = vunpack.c.l.b16 %v330
    %v482 = vunpack.c.h.b16 %v330
    %v483 = vunpack.c.l.b16 %v331
    %v484 = vunpack.c.h.b16 %v331
    %v485 = vunpack.c.l.b16 %v332
    %v486 = vunpack.c.h.b16 %v332
    %v487 = vunpack.c.l.b16 %v333
    %v488 = vunpack.c.h.b16 %v333
    %v489 = vunpack.c.l.b16 %v334
    %v490 = vunpack.c.h.b16 %v334
    %v491 = vunpack.c.l.b16 %v335
    %v492 = vunpack.c.h.b16 %v335
    %v493 = vunpack.c.l.b16 %v336
    %v494 = vunpack.c.h.b16 %v336
    %v495 = vunpack.c.l.b16 %v337
    %v496 = vunpack.c.h.b16 %v337
    %v497 = vunpack.c.l.b16 %v338
    %v498 = vunpack.c.h.b16 %v338
    %v499 = vunpack.c.l.b16 %v339
    %v500 = vunpack.c.h.b16 %v339
    %v501 = vunpack.c.l.b16 %v340
    %v502 = vunpack.c.h.b16 %v340
    %v503 = vunpack.c.l.b16 %v341
    %v504 = vunpack.c.h.b16 %v341
    %v505 = vunpack.c.l.b16 %v342
    %v506 = vunpack.c.h.b16 %v342
    %v507 = vunpack.c.l.b16 %v343
    %v508 = vunpack.c.h.b16 %v343
    %v509 = vunpack.c.l.b16 %v344
    %v510 = vunpack.c.h.b16 %v344
    %v511 = vunpack.c.l.b16 %v345
    %v512 = vunpack.c.h.b16 %v345
    %v513 = vunpack.c.l.b16 %v346
    %v514 = vunpack.c.h.b16 %v346
    %v515 = vunpack.c.l.b16 %v347
    %v516 = vunpack.c.h.b16 %v347
    %v517 = vunpack.c.l.b16 %v348
    %v518 = vunpack.c.h.b16 %v348
    %v519 = vunpack.c.l.b16 %v349
    %v520 = vunpack.c.h.b16 %v349
    %v521 = vunpack.c.l.b16 %v350
    %v522 = vunpack.c.h.b16 %v350
    %v523 = vunpack.c.l.b16 %v351
    %v524 = vunpack.c.h.b16 %v351
    %v525 = vunpack.c.l.b16 %v352
    %v526 = vunpack.c.h.b16 %v352
    %v527 = vunpack.c.l.b16 %v353
    %v528 = vunpack.c.h.b16 %v353
    %v529 = vunpack.c.l.b16 %v354
    %v530 = vunpack.c.h.b16 %v354
    %v531 = vunpack.c.l.b16 %v355
    %v532 = vunpack.c.h.b16 %v355
    %v533 = vunpack.c.l.b16 %v356
    %v534 = vunpack.c.h.b16 %v356
    %v535 = vunpack.c.l.b16 %v357
    %v536 = vunpack.c.h.b16 %v357
    %v537 = vunpack.c.l.b16 %v358
    %v538 = vunpack.c.h.b16 %v358
    %v539 = vunpack.c.l.b16 %v359
    %v540 = vunpack.c.h.b16 %v359
    %v541 = vunpack.c.l.b16 %v360
    %v542 = vunpack.c.h.b16 %v360
    %v543 = vunpack.c.l.b16 %v361
    %v544 = vunpack.c.h.b16 %v361
    %v545 = vunpack.c.l.b16 %v362
    %v546 = vunpack.c.h.b16 %v362
    %v547 = vunpack.c.l.b16 %v363
    %v548 = vunpack.c.h.b16 %v363
    %v549 = vunpack.c.l.b16 %v364
    %v550 = vunpack.c.h.b16 %v364
    %v551 = vunpack.c.l.b16 %v365
    %v552 = vunpack.c.h.b16 %v365
    %v553 = vunpack.c.l.b16 %v366
    %v554 = vunpack.c.h.b16 %v366
    %v555 = vunpack.c.l.b16 %v367
    %v556 = vunpack.c.h.b16 %v367
    %v557 = vunpack.c.l.b16 %v368
    %v558 = vunpack.c.h.b16 %v368
    %v559 = vunpack.c.l.b16 %v369
    %v560 = vunpack.c.h.b16 %v369
    %v561 = vunpack.c.l.b16 %v370
    %v562 = vunpack.c.h.b16 %v370
    %v563 = vunpack.c.l.b16 %v371
    %v564 = vunpack.c.h.b16 %v371
    %v565 = vunpack.c.l.b16 %v372
    %v566 = vunpack.c.h.b16 %v372
    %v567 = vunpack.c.l.b16 %v373
    %v568 = vunpack.c.h.b16 %v373
    %v569 = vunpack.c.l.b16 %v374
    %v570 = vunpack.c.h.b16 %v374
    %v571 = vunpack.c.l.b16 %v375
    %v572 = vunpack.c.h.b16 %v375
    %v573 = vunpack.c.l.b16 %v376
    %v574 = vunpack.c.h.b16 %v376
    %v575 = vunpack.c.l.b16 %v377
    %v576 = vunpack.c.h.b16 %v377
    %v577 = vunpack.c.l.b16 %v378
    %v578 = vunpack.c.h.b16 %v378
    %v579 = vunpack.c.l.b16 %v379
    %v580 = vunpack.c.h.b16 %v379
    %v581 = vunpack.c.l.b16 %v380
    %v582 = vunpack.c.h.b16 %v380
    %v583 = vunpack.c.l.b16 %v381
    %v584 = vunpack.c.h.b16 %v381
    %v585 = vunpack.c.l.b16 %v382
    %v586 = vunpack.c.h.b16 %v382
    %v587 = vunpack.c.l.b16 %v383
    %v588 = vunpack.c.h.b16 %v383
    %v589 = vunpack.c.l.b16 %v384
    %v590 = vunpack.c.h.b16 %v384
    %v591 = vunpack.c.l.b16 %v385
    %v592 = vunpack.c.h.b16 %v385
    %v593 = vunpack.c.l.b16 %v386
    %v594 = vunpack.c.h.b16 %v386
    %v595 = vunpack.c.l.b16 %v387
    %v596 = vunpack.c.h.b16 %v387
    %v597 = vunpack.c.l.b16 %v388
    %v598 = vunpack.c.h.b16 %v388
    %v599 = vunpack.c.l.b16 %v389
    %v600 = vunpack.c.h.b16 %v389
    %v601 = vunpack.c.l.b16 %v390
    %v602 = vunpack.c.h.b16 %v390
    %v603 = vunpack.c.l.b16 %v391
    %v604 = vunpack.c.h.b16 %v391
    %v605 = vunpack.c.l.b16 %v392
    %v606 = vunpack.c.h.b16 %v392
    %v607 = vpack.c.b16 %v483, %v479
    %v608 = vpack.c.b16 %v484, %v480
    %v609 = vpack.c.b16 %v485, %v481
    %v610 = vpack.c.b16 %v486, %v482
    %v611 = vpack.c.b16 %v491, %v487
    %v612 = vpack.c.b16 %v492, %v488
    %v613 = vpack.c.b16 %v493, %v489
    %v614 = vpack.c.b16 %v494, %v490
    %v615 = vpack.c.b16 %v499, %v495
    %v616 = vpack.c.b16 %v500, %v496
    %v617 = vpack.c.b16 %v501, %v497
    %v618 = vpack.c.b16 %v502, %v498
    %v619 = vpack.c.b16 %v507, %v503
    %v620 = vpack.c.b16 %v508, %v504
    %v621 = vpack.c.b16 %v509, %v505
    %v622 = vpack.c.b16 %v510, %v506
    %v623 = vpack.c.b16 %v515, %v511
    %v624 = vpack.c.b16 %v516, %v512
    %v625 = vpack.c.b16 %v517, %v513
    %v626 = vpack.c.b16 %v518, %v514
    %v627 = vpack.c.b16 %v523, %v519
    %v628 = vpack.c.b16 %v524, %v520
    %v629 = vpack.c.b16 %v525, %v521
    %v630 = vpack.c.b16 %v526, %v522
    %v631 = vpack.c.b16 %v531, %v527
    %v632 = vpack.c.b16 %v532, %v528
    %v633 = vpack.c.b16 %v533, %v529
    %v634 = vpack.c.b16 %v534, %v530
    %v635 = vpack.c.b16 %v539, %v535
    %v636 = vpack.c.b16 %v540, %v536
    %v637 = vpack.c.b16 %v541, %v537
    %v638 = vpack.c.b16 %v542, %v538
    %v639 = vpack.c.b16 %v547, %v543
    %v640 = vpack.c.b16 %v548, %v544
    %v641 = vpack.c.b16 %v549, %v545
    %v642 = vpack.c.b16 %v550, %v546
    %v643 = vpack.c.b16 %v555, %v551
    %v644 = vpack.c.b16 %v556, %v552
    %v645 = vpack.c.b16 %v557, %v553
    %v646 = vpack.c.b16 %v558, %v554
    %v647 = vpack.c.b16 %v563, %v559
    %v648 = vpack.c.b16 %v564, %v560
    %v649 = vpack.c.b16 %v565, %v561
    %v650 = vpack.c.b16 %v566, %v562
    %v651 = vpack.c.b16 %v571, %v567
    %v652 = vpack.c.b16 %v572, %v568
    %v653 = vpack.c.b16 %v573, %v569
    %v654 = vpack.c.b16 %v574, %v570
    %v655 = vpack.c.b16 %v579, %v575
    %v656 = vpack.c.b16 %v580, %v576
    %v657 = vpack.c.b16 %v581, %v577
    %v658 = vpack.c.b16 %v582, %v578
    %v659 = vpack.c.b16 %v587, %v583
    %v660 = vpack.c.b16 %v588, %v584
    %v661 = vpack.c.b16 %v589, %v585
    %v662 = vpack.c.b16 %v590, %v586
    %v663 = vpack.c.b16 %v595, %v591
    %v664 = vpack.c.b16 %v596, %v592
    %v665 = vpack.c.b16 %v597, %v593
    %v666 = vpack.c.b16 %v598, %v594
    %v667 = vpack.c.b16 %v603, %v599
    %v668 = vpack.c.b16 %v604, %v600
    %v669 = vpack.c.b16 %v605, %v601
    %v670 = vpack.c.b16 %v606, %v602
    %735 = vmatprep.subr.bf16.mxu0 %v636
    %736 = vmatpush1.bf16.msra.mxu0 %v635
    %737 = vmatprep.subr.bf16.mxu0 %v632
    %738 = vmatpush1.bf16.msra.mxu0 %v631
    %739 = vmatprep.subr.bf16.mxu0 %v628
    %740 = vmatpush1.bf16.msra.mxu0 %v627
    %741 = vmatprep.subr.bf16.mxu0 %v624
    %742 = vmatpush1.bf16.msra.mxu0 %v623
    %743 = vmatprep.subr.bf16.mxu0 %v620
    %744 = vmatpush1.bf16.msra.mxu0 %v619
    %745 = vmatprep.subr.bf16.mxu0 %v616
    %746 = vmatpush1.bf16.msra.mxu0 %v615
    %747 = vmatprep.subr.bf16.mxu0 %v612
    %748 = vmatpush1.bf16.msra.mxu0 %v611
    %749 = vmatprep.subr.bf16.mxu0 %v608
    %750 = vmatpush1.bf16.msra.mxu0 %v607
    %751 = vmatprep.subr.bf16.mxu0 %v668
    %752 = vmatpush2.bf16.msra.mxu0 %v667
    %753 = vmatprep.subr.bf16.mxu0 %v664
    %754 = vmatpush2.bf16.msra.mxu0 %v663
    %755 = vmatprep.subr.bf16.mxu0 %v660
    %756 = vmatpush2.bf16.msra.mxu0 %v659
    %757 = vmatprep.subr.bf16.mxu0 %v656
    %758 = vmatpush2.bf16.msra.mxu0 %v655
    %759 = vmatprep.subr.bf16.mxu0 %v652
    %760 = vmatpush2.bf16.msra.mxu0 %v651
    %761 = vmatprep.subr.bf16.mxu0 %v648
    %762 = vmatpush2.bf16.msra.mxu0 %v647
    %763 = vmatprep.subr.bf16.mxu0 %v644
    %764 = vmatpush2.bf16.msra.mxu0 %v643
    %765 = vmatprep.subr.bf16.mxu0 %v640
    %766 = vmatpush2.bf16.msra.mxu0 %v639
    %767 = vmatprep.mubr.bf16.mxu0 %v328
    %768 = vmatmul.mubr.bf16.gmra.mxu0 %v327
    %v769 = vpop.f32.mrf.mxu0
    %v770 = vadd.f32 %v398, %v769
    %v771 = vpop.f32.mrf.mxu0
    %v772 = vadd.f32 %v402, %v771
    %v773 = vpop.f32.mrf.mxu0
    %v774 = vpop.f32.mrf.mxu0
    %775 = vdwg.mxu0
    %776 = vmatprep.subr.bf16.mxu0 %v638
    %777 = vmatpush1.bf16.msra.mxu0 %v637
    %778 = vmatprep.subr.bf16.mxu0 %v634
    %779 = vmatpush1.bf16.msra.mxu0 %v633
    %780 = vmatprep.subr.bf16.mxu0 %v630
    %781 = vmatpush1.bf16.msra.mxu0 %v629
    %782 = vmatprep.subr.bf16.mxu0 %v626
    %783 = vmatpush1.bf16.msra.mxu0 %v625
    %784 = vmatprep.subr.bf16.mxu0 %v622
    %785 = vmatpush1.bf16.msra.mxu0 %v621
    %786 = vmatprep.subr.bf16.mxu0 %v618
    %787 = vmatpush1.bf16.msra.mxu0 %v617
    %788 = vmatprep.subr.bf16.mxu0 %v614
    %789 = vmatpush1.bf16.msra.mxu0 %v613
    %790 = vmatprep.subr.bf16.mxu0 %v610
    %791 = vmatpush1.bf16.msra.mxu0 %v609
    %792 = vmatprep.subr.bf16.mxu0 %v670
    %793 = vmatpush2.bf16.msra.mxu0 %v669
    %794 = vmatprep.subr.bf16.mxu0 %v666
    %795 = vmatpush2.bf16.msra.mxu0 %v665
    %796 = vmatprep.subr.bf16.mxu0 %v662
    %797 = vmatpush2.bf16.msra.mxu0 %v661
    %798 = vmatprep.subr.bf16.mxu0 %v658
    %799 = vmatpush2.bf16.msra.mxu0 %v657
    %800 = vmatprep.subr.bf16.mxu0 %v654
    %801 = vmatpush2.bf16.msra.mxu0 %v653
    %802 = vmatprep.subr.bf16.mxu0 %v650
    %803 = vmatpush2.bf16.msra.mxu0 %v649
    %804 = vmatprep.subr.bf16.mxu0 %v646
    %805 = vmatpush2.bf16.msra.mxu0 %v645
    %806 = vmatprep.subr.bf16.mxu0 %v642
    %807 = vmatpush2.bf16.msra.mxu0 %v641
    %808 = vmatprep.mubr.bf16.mxu0 %v328
    %809 = vmatmul.mubr.bf16.gmra.mxu0 %v327
    %v810 = vpop.f32.mrf.mxu0
    %v811 = vadd.f32 %v406, %v810
    %v812 = vpop.f32.mrf.mxu0
    %v813 = vadd.f32 %v410, %v812
    %v814 = vpop.f32.mrf.mxu0
    %v815 = vpop.f32.mrf.mxu0
    %816 = vdwg.mxu0
    %v817 = vmax.f32 %v770, 0.0
    %v818 = vmax.f32 %v772, 0.0
    %v819 = vmax.f32 %v811, 0.0
    %v820 = vmax.f32 %v813, 0.0
    %821 = vst [vmem:[#allocation10] sm:$0xff] %v817
    %822 = vst [vmem:[#allocation10 + $0x8] sm:$0xff] %v818
    %823 = vst [vmem:[#allocation10 + $0x10] sm:$0xff] %v819
    %824 = vst [vmem:[#allocation10 + $0x18] sm:$0xff] %v820
    // Predicated region
    $region46: #{tpu_custom_call.1} parent=1 // pred_check
      _
    $region47: #{tpu_custom_call.1} parent=1 // pred_check_branch
      %826 = sbr.rel (0) target = $region49
    $region48: #{tpu_custom_call.1} parent=1 // pred_region
      %s828 = ssub.s32 512, 512
      %829 = vsyncadd [#allocation4], %s828
      %s831 = sshll.u32 [#allocation10], 4
      %s832 = int_to_ptr.vmem [resolvable:$true] %s831
      %834 = dma.vmem_to_hbm [thread:$0]  %s832, 512, %s7, [#allocation4]
    $region49: #{tpu_custom_call.1} parent=1 // pred_fallthru
      _
    // Predicated region
    $region50: #{tpu_custom_call.1} parent=1 // pred_check
      _
    $region51: #{tpu_custom_call.1} parent=1 // pred_check_branch
      %836 = sbr.rel (0) target = $region53
    $region52: #{tpu_custom_call.1} parent=1 // pred_region
      %837 = dma.done [#allocation4], 512
    $region53: #{tpu_custom_call.1} parent=1 // pred_fallthru
      _
    %838 = vsyncpa [#allocation3], 1
    %839 = vsyncpa [#allocation6], 1
    %840 = vsyncpa [#allocation9], 1
    %841 = vsyncpa [#allocation4], 1

</llo_original>
